<compile_context>
chip_gen: v6e
topology: v6e:2x2x1
jax: 0.10.0
libtpu: 0.0.40
codegen_flags: <defaults>
</compile_context>

<pallas_src>
import functools

import jax
import jax.numpy as jnp
from jax.experimental import pallas as pl
from jax.experimental.pallas import tpu as pltpu


# ----------------------------------------------------------------------------
# helpers
# ----------------------------------------------------------------------------
def _round_up(v, m):
    return (v + m - 1) // m * m


def _sublane_multiple(dtype):
    # minimum second-minor tile: 8 rows for 32-bit, 16 for 16-bit, 32 for 8-bit
    itemsize = jnp.dtype(dtype).itemsize
    return max(8, 32 // itemsize)


def _divisor_tiles(dim_p, unit):
    # descending multiples of `unit` that evenly divide dim_p
    q = dim_p // unit
    return [unit * d for d in range(q, 0, -1) if q % d == 0]


def _vmem_budget():
    cap = 64 * 1024 * 1024  # conservative fallback == v7x per-TC VMEM
    try:
        info = pltpu.get_tpu_info()
        cap = int(getattr(info, "vmem_capacity_bytes", cap) or cap)
    except Exception:
        pass
    budget = min(int(cap * 0.65), 96 * 1024 * 1024)   # tile footprint budget
    limit = min(int(cap * 0.85), 112 * 1024 * 1024)   # scoped VMEM limit
    return budget, limit


def _select_tiles(m, k_p, n_p, dtype, budget):
    """Pick (tm, tk, tn). Prefers full weight residency (tk=k_p, tn=n_p)."""
    itemsize = jnp.dtype(dtype).itemsize
    sub = _sublane_multiple(dtype)
    m_p_min = _round_up(max(m, 1), sub)

    def fits(tm, tk, tn):
        acc = 0 if tk >= k_p else tm * tn * 4          # f32 accumulator
        footprint = (2 * (tm * tk + tk * tn + tm * tn) * itemsize   # dbl-buf
                     + 2 * tn * itemsize                            # bias
                     + acc)
        return footprint <= budget

    tm_cands = []
    for c in (512, 256, 128, 64, 32, 16, 8):
        if c < sub:
            continue
        c = min(c, m_p_min)
        if c not in tm_cands:
            tm_cands.append(c)
    if not tm_cands:
        tm_cands = [m_p_min]

    # Pass 1: full weight residency (K and N grid collapse to 1); the weight
    # block index is constant over the grid, so W is DMA'd exactly once.
    for tm in tm_cands:
        if fits(tm, k_p, n_p):
            return tm, k_p, n_p

    # Pass 2: weight too large for VMEM; prefer the widest N tile (lane-dense
    # stores, fewest x re-reads), then the widest K tile, then the largest tm.
    for tn in _divisor_tiles(n_p, 128):
        for tk in _divisor_tiles(k_p, 128):
            for tm in tm_cands:
                if fits(tm, tk, tn):
                    return tm, tk, tn

    return tm_cands[-1], 128, 128


# ----------------------------------------------------------------------------
# kernels
# ----------------------------------------------------------------------------
def _fused_linear_single_k_kernel(x_ref, w_ref, b_ref, o_ref):
    # K grid == 1: no accumulator scratch, no init/epilogue phases.
    o_ref[...] = (jnp.dot(x_ref[...], w_ref[...],
                          preferred_element_type=jnp.float32)
                  + b_ref[...].astype(jnp.float32)).astype(o_ref.dtype)


def _fused_linear_acc_kernel(x_ref, w_ref, b_ref, o_ref, acc_ref):
    k = pl.program_id(2)

    @pl.when(k == 0)
    def _():
        acc_ref[...] = jnp.zeros_like(acc_ref)

    acc_ref[...] += jnp.dot(x_ref[...], w_ref[...],
                            preferred_element_type=jnp.float32)

    @pl.when(k == pl.num_programs(2) - 1)
    def _():
        o_ref[...] = (acc_ref[...]
                      + b_ref[...].astype(jnp.float32)).astype(o_ref.dtype)


# ----------------------------------------------------------------------------
# parameter prep (call ONCE at init time — hoisted off the forward hot path)
# ----------------------------------------------------------------------------
def prepare_extended_linear_params(w_orig, b_orig, w_new, b_new):
    """Fuse the two nn.Linear parameter sets once.

    Returns (w_fused, b_fused, out_features) where
      w_fused: (K_pad, N_pad) = concat([W_orig, W_new], 0).T, lane-padded
      b_fused: (1, N_pad)     = concat([b_orig, b_new]), lane-padded
    """
    assert w_orig.shape[1] == w_new.shape[1], "in_features mismatch"
    k = w_orig.shape[1]
    n = w_orig.shape[0] + w_new.shape[0]
    k_p = _round_up(k, 128)
    n_p = _round_up(n, 128)

    w_t = jnp.concatenate([w_orig, w_new], axis=0).T                 # (K, N)
    w_fused = jnp.pad(w_t, ((0, k_p - k), (0, n_p - n)))
    b_cat = jnp.concatenate([b_orig, b_new], axis=0).reshape(1, n)
    b_fused = jnp.pad(b_cat, ((0, 0), (0, n_p - n)))
    return w_fused, b_fused, n


# ----------------------------------------------------------------------------
# forward
# ----------------------------------------------------------------------------
def extended_linear_fused(x, w_fused, b_fused, out_features, *, interpret=False):
    """y = x @ concat([W_orig, W_new], 0).T + concat([b_orig, b_new]).

    x        : (..., in_features)
    w_fused  : (K_pad, N_pad)   from prepare_extended_linear_params
    b_fused  : (1, N_pad)
    returns  : (..., out_features)
    """
    in_features = x.shape[-1]
    k_p, n_p = w_fused.shape
    assert k_p == _round_up(in_features, 128), "w_fused / x in_features mismatch"
    assert b_fused.shape == (1, n_p)
    assert out_features <= n_p

    lead_shape = x.shape[:-1]
    m = 1
    for d in lead_shape:
        m *= d
    dtype = x.dtype
    itemsize = jnp.dtype(dtype).itemsize
    sub = _sublane_multiple(dtype)

    budget, vmem_limit = _vmem_budget()
    tm, tk, tn = _select_tiles(m, k_p, n_p, dtype, budget)

    # v7x has 2 TensorCores; if everything collapsed to a single grid step,
    # split M so the "parallel" M axis can feed both cores.
    m_p_min = _round_up(max(m, 1), sub)
    if tk >= k_p and tn >= n_p and tm >= m_p_min and m_p_min >= 2 * sub:
        tm = _round_up(-(-m_p_min // 2), sub)

    m_p = _round_up(max(m, 1), tm)
    grid = (m_p // tm, n_p // tn, k_p // tk)
    single_k = grid[2] == 1

    x_flat = x.reshape(m, in_features)
    x_pad = jnp.pad(x_flat, ((0, m_p - m), (0, k_p - in_features)))

    cost = pl.CostEstimate(
        flops=2 * m_p * k_p * n_p,
        transcendentals=0,
        bytes_accessed=(x_pad.size * itemsize
                        + w_fused.size * jnp.dtype(w_fused.dtype).itemsize
                        + b_fused.size * jnp.dtype(b_fused.dtype).itemsize
                        + m_p * n_p * itemsize))

    in_specs = [
        # x streams over (M, K) tiles.
        pl.BlockSpec((tm, tk), lambda i, j, k: (i, k)),
        # weight: when tk==K_pad and tn==N_pad the block index is constant
        # over the whole grid -> DMA'd into VMEM once, truly resident.
        pl.BlockSpec((tk, tn), lambda i, j, k: (k, j)),
        pl.BlockSpec((1, tn), lambda i, j, k: (0, j)),
    ]
    out_spec = pl.BlockSpec((tm, tn), lambda i, j, k: (i, j))

    if single_k:
        kernel = _fused_linear_single_k_kernel
        scratch_shapes = []
    else:
        kernel = _fused_linear_acc_kernel
        scratch_shapes = [pltpu.VMEM((tm, tn), jnp.float32)]

    out_pad = pl.pallas_call(
        kernel,
        out_shape=jax.ShapeDtypeStruct((m_p, n_p), dtype),
        grid=grid,
        in_specs=in_specs,
        out_specs=out_spec,
        scratch_shapes=scratch_shapes,
        compiler_params=pltpu.CompilerParams(
            dimension_semantics=("parallel", "parallel", "arbitrary"),
            vmem_limit_bytes=vmem_limit),
        cost_estimate=cost,
        interpret=interpret,
    )(x_pad, w_fused, b_fused)

    out = out_pad[:m, :out_features]
    return out.reshape(*lead_shape, out_features)


def extended_linear(x, w_orig, b_orig, w_new, b_new):
    """Convenience wrapper matching the PyTorch module signature.

    NOTE: in real use call prepare_extended_linear_params() once at init and
    reuse its result — the weight concat/transpose/pad must not run per call.
    """
    w_fused, b_fused, out_features = prepare_extended_linear_params(
        w_orig, b_orig, w_new, b_new)
    return extended_linear_fused(x, w_fused, b_fused, out_features)


# ----------------------------------------------------------------------------
# demo / correctness check
# ----------------------------------------------------------------------------
if __name__ == "__main__":
    key = jax.random.PRNGKey(0)
    k_x, k_wo, k_bo, k_wn, k_bn = jax.random.split(key, 5)

    batch, seq, in_features = 2, 8, 32
    out_orig, out_new = 48, 16

    x = jax.random.normal(k_x, (batch, seq, in_features), dtype=jnp.float32)
    # deterministic synthetic params (nn.Linear convention: W is (out, in))
    w_orig = jax.random.normal(k_wo, (out_orig, in_features), jnp.float32) * 0.1
    b_orig = jax.random.normal(k_bo, (out_orig,), jnp.float32) * 0.1
    w_new = jax.random.normal(k_wn, (out_new, in_features), jnp.float32) * 0.1
    b_new = jax.random.normal(k_bn, (out_new,), jnp.float32) * 0.1

    # one-time (init-time) weight fusion, hoisted out of the forward path
    w_fused, b_fused, out_features = prepare_extended_linear_params(
        w_orig, b_orig, w_new, b_new)
    w_fused, b_fused = jax.block_until_ready((w_fused, b_fused))

    fwd = jax.jit(functools.partial(extended_linear_fused,
                                    out_features=out_features))
    out = jax.block_until_ready(fwd(x, w_fused, b_fused))

    # pure-JAX reference (matches PyTorch ExtendedLinear.forward)
    ref = jnp.concatenate(
        [x @ w_orig.T + b_orig, x @ w_new.T + b_new], axis=-1)
    assert out.shape == (batch, seq, out_orig + out_new)
    assert jnp.allclose(out, ref, atol=1e-5, rtol=1e-5)

    print("KERNEL_OK")
</pallas_src>

<mosaic_0001>
module attributes {stable_mosaic.version = 11 : i64} {
  func.func @_fused_linear_single_k_kernel(%arg0: i32, %arg1: i32, %arg2: i32, %arg3: memref<8x128xf32, #tpu.memory_space<vmem>>, %arg4: memref<128x128xf32, #tpu.memory_space<vmem>>, %arg5: memref<1x128xf32, #tpu.memory_space<vmem>>, %arg6: memref<8x128xf32, #tpu.memory_space<vmem>>) attributes {dimension_semantics = [#tpu.dimension_semantics<parallel>, #tpu.dimension_semantics<parallel>, #tpu.dimension_semantics<arbitrary>], iteration_bounds = array<i64: 2, 1, 1>, scalar_prefetch = 0 : i64, scratch_operands = 0 : i64, tpu.core_type = #tpu.core_type<tc>, window_params = [{transform_indices = @transform_0, window_bounds = array<i64: 8, 128>}, {transform_indices = @transform_1, window_bounds = array<i64: 128, 128>}, {transform_indices = @transform_2, window_bounds = array<i64: 1, 128>}, {transform_indices = @transform_3, window_bounds = array<i64: 8, 128>}]} {
    %c0 = arith.constant 0 : index
    %c0_0 = arith.constant 0 : index
    %0 = vector.load %arg3[%c0, %c0_0] : memref<8x128xf32, #tpu.memory_space<vmem>>, vector<8x128xf32>
    %c0_1 = arith.constant 0 : index
    %c0_2 = arith.constant 0 : index
    %1 = vector.load %arg4[%c0_1, %c0_2] : memref<128x128xf32, #tpu.memory_space<vmem>>, vector<128x128xf32>
    %cst = arith.constant dense<0.000000e+00> : vector<8x128xf32>
    %2 = tpu.matmul %0, %1, %cst {dimension_numbers = #tpu.dot_dimension_numbers<[1], [0], [0], [1], [0, 0, 1, 1], [], []>} : vector<8x128xf32>, vector<128x128xf32>, vector<8x128xf32> -> vector<8x128xf32>
    %c0_3 = arith.constant 0 : index
    %c0_4 = arith.constant 0 : index
    %3 = vector.load %arg5[%c0_3, %c0_4] : memref<1x128xf32, #tpu.memory_space<vmem>>, vector<1x128xf32>
    %4 = vector.broadcast %3 : vector<1x128xf32> to vector<8x128xf32>
    %5 = arith.addf %2, %4 : vector<8x128xf32>
    %c0_5 = arith.constant 0 : index
    %c0_6 = arith.constant 0 : index
    %6 = vector.load %arg6[%c0_5, %c0_6] : memref<8x128xf32, #tpu.memory_space<vmem>>, vector<8x128xf32>
    tpu.vector_store %arg6[%c0_5, %c0_6], %5 {strides = array<i32>} : memref<8x128xf32, #tpu.memory_space<vmem>>, vector<8x128xf32>,
    return
  }
  func.func @transform_0(%arg0: i32, %arg1: i32, %arg2: i32) -> (i32, i32) {
    %c0_i32 = arith.constant 0 : i32
    return %arg0, %arg2 : i32, i32
  }
  func.func @transform_1(%arg0: i32, %arg1: i32, %arg2: i32) -> (i32, i32) {
    %c0_i32 = arith.constant 0 : i32
    return %arg2, %arg1 : i32, i32
  }
  func.func @transform_2(%arg0: i32, %arg1: i32, %arg2: i32) -> (i32, i32) {
    %c0_i32 = arith.constant 0 : i32
    %c0_i32_0 = arith.constant 0 : i32
    return %c0_i32, %arg1 : i32, i32
  }
  func.func @transform_3(%arg0: i32, %arg1: i32, %arg2: i32) -> (i32, i32) {
    %c0_i32 = arith.constant 0 : i32
    return %arg0, %arg1 : i32, i32
  }
}

</mosaic_0001>

<llo_original>
// kernel: extended_linear_fused.1
$region0: #{extended_linear_fused.1}
  #allocation0 [shape = 'u32[]', space=smem, size = 0x4, offset = 0x4, fixed_abs, tag = 'smem constant byte address 0x4 - core index']
  #allocation1 [shape = 'u32[144,128]{1,0:T(1,128)}', space=vmem, size = 0x12000, scoped, tag = 'internal scratch']
  %s0 = inlined_call_operand.vmem [shape: f32[16,128], index: 0, kind: input, shape index: {}]
  %s1 = inlined_call_operand.hbm [shape: f32[128,128], index: 1, kind: input, shape index: {}]
  %s2 = inlined_call_operand.vmem [shape: f32[1,128], index: 2, kind: input, shape index: {}]
  %s3 = inlined_call_operand.vmem [shape: f32[16,128], index: 3, kind: output, shape index: {}]
  %s4 = sld [smem:[#allocation0]]
  $region49: #{extended_linear_fused.1} parent=0
    _
  %s6 = ssub.s32 1, %s4
  %s7 = scalar_select 0, %s6, %s4
  $region1: #{extended_linear_fused.1} parent=0
    #allocation2 [shape = 'u8[65536]{0}', space=vmem, size = 0x10000, scoped, tag = 'input window, operand 1, single buffered']
    #allocation3 [shape = 's32[2]{0}', space=sflag, size = 0x8, scoped, tag = 'scoped memory for extended_linear_fused.1']
    %8 = vsyncpa [#allocation3], 0
    loop: start=0, step=1, limit=4
    $region2: #{extended_linear_fused.1} parent=1 // loop_pre_header
      _
    $region3: #{extended_linear_fused.1} parent=1 // loop_header
      %s10 = sphi 0, %s14
      %p11 = scmp.ge.s32.totalorder %s10, 4
      %s17 = sphi 0, %s36
      %s18 = sphi 0, %s32
      %s19 = sphi 0, %s28
      %s20 = sphi 0, %s17
      %s21 = sphi 0, %s18
      %s22 = sphi 0, %s19
      %s23 = sphi 0, %s20
      %s24 = sphi 0, %s21
      %s25 = sphi 0, %s22
      %s41 = sphi 0, %s43
      %s44 = sphi 0, %s41
      %s45 = sphi 0, %s44
      %s61 = sphi 0, %s45
      %s69 = sphi 0, %s71
      %s72 = sphi 0, %s69
      %s73 = sphi 0, %s72
      %s89 = sphi 0, %s73
      %s95 = sphi 0, %s97
      %s98 = sphi 0, %s95
      %s99 = sphi 0, %s98
      %s115 = sphi 0, %s99
      %s123 = sphi 0, %s125
      %s126 = sphi 0, %s123
      %s127 = sphi 0, %s126
      %s143 = sphi 0, %s127
    $region4: #{extended_linear_fused.1} parent=1 // loop_header_branch
      %13 = sbr.rel (%p11) target = $region8
    $region5: #{extended_linear_fused.1} parent=1 // loop_body
      %s15 = ssub.s32 %s10, 1
      %s16 = ssub.s32 %s10, 2
      %s26 = sadd.s32 1, %s19
      %p27 = scmp.ge.s32.totalorder %s26, 1
      %s28 = scalar_select %p27, 0, %s26
      %s29 = sadd.s32 1, %s18
      %s30 = scalar_select %p27, %s29, %s18
      %p31 = scmp.ge.s32.totalorder %s30, 1
      %s32 = scalar_select %p31, 0, %s30
      %s33 = sadd.s32 1, %s17
      %s34 = scalar_select %p31, %s33, %s17
      %p35 = scmp.ge.s32.totalorder %s34, 2
      %s36 = scalar_select %p35, 0, %s34
      %s37 = ssub.s32 %s17, %s36
      %s38 = ssub.s32 %s19, %s28
      %s39 = sor.u32 %s37, %s38
      %p40 = scmp.eq.s32.totalorder %s39, 0
      %s42 = sadd.s32 %s41, 1
      %s43 = scalar_select %p40, %s41, %s42
      %p46 = pneg %p40
      %p47 = scmp.eq.s32.totalorder %s10, 1
      %p48 = por %p46, %p47
      %p49 = scmp.ne.s32.totalorder %s41, %s44
      %p50 = scmp.eq.s32.totalorder %s10, 0
      %p51 = por %p49, %p50
      %p52 = scmp.ne.s32.totalorder %s41, %s44
      %p53 = scmp.eq.s32.totalorder %s15, 1
      %p54 = por %p52, %p53
      %p55 = scmp.ne.s32.totalorder %s44, %s45
      %p56 = scmp.eq.s32.totalorder %s15, 0
      %p57 = por %p55, %p56
      %p58 = scmp.ne.s32.totalorder %s44, %s45
      %p59 = scmp.eq.s32.totalorder %s16, 1
      %p60 = por %p58, %p59
      %p62 = scmp.ne.s32.totalorder %s45, %s61
      %p63 = scmp.eq.s32.totalorder %s16, 0
      %p64 = por %p62, %p63
      %s65 = ssub.s32 %s19, %s28
      %s66 = ssub.s32 %s18, %s32
      %s67 = sor.u32 %s65, %s66
      %p68 = scmp.eq.s32.totalorder %s67, 0
      %s70 = sadd.s32 %s69, 1
      %s71 = scalar_select %p68, %s69, %s70
      %p74 = pneg %p68
      %p75 = scmp.eq.s32.totalorder %s10, 1
      %p76 = por %p74, %p75
      %p77 = scmp.ne.s32.totalorder %s69, %s72
      %p78 = scmp.eq.s32.totalorder %s10, 0
      %p79 = por %p77, %p78
      %p80 = scmp.ne.s32.totalorder %s69, %s72
      %p81 = scmp.eq.s32.totalorder %s15, 1
      %p82 = por %p80, %p81
      %p83 = scmp.ne.s32.totalorder %s72, %s73
      %p84 = scmp.eq.s32.totalorder %s15, 0
      %p85 = por %p83, %p84
      %p86 = scmp.ne.s32.totalorder %s72, %s73
      %p87 = scmp.eq.s32.totalorder %s16, 1
      %p88 = por %p86, %p87
      %p90 = scmp.ne.s32.totalorder %s73, %s89
      %p91 = scmp.eq.s32.totalorder %s16, 0
      %p92 = por %p90, %p91
      %s93 = ssub.s32 %s18, %s32
      %p94 = scmp.eq.s32.totalorder %s93, 0
      %s96 = sadd.s32 %s95, 1
      %s97 = scalar_select %p94, %s95, %s96
      %p100 = pneg %p94
      %p101 = scmp.eq.s32.totalorder %s10, 1
      %p102 = por %p100, %p101
      %p103 = scmp.ne.s32.totalorder %s95, %s98
      %p104 = scmp.eq.s32.totalorder %s10, 0
      %p105 = por %p103, %p104
      %p106 = scmp.ne.s32.totalorder %s95, %s98
      %p107 = scmp.eq.s32.totalorder %s15, 1
      %p108 = por %p106, %p107
      %p109 = scmp.ne.s32.totalorder %s98, %s99
      %p110 = scmp.eq.s32.totalorder %s15, 0
      %p111 = por %p109, %p110
      %p112 = scmp.ne.s32.totalorder %s98, %s99
      %p113 = scmp.eq.s32.totalorder %s16, 1
      %p114 = por %p112, %p113
      %p116 = scmp.ne.s32.totalorder %s99, %s115
      %p117 = scmp.eq.s32.totalorder %s16, 0
      %p118 = por %p116, %p117
      %s119 = ssub.s32 %s17, %s36
      %s120 = ssub.s32 %s18, %s32
      %s121 = sor.u32 %s119, %s120
      %p122 = scmp.eq.s32.totalorder %s121, 0
      %s124 = sadd.s32 %s123, 1
      %s125 = scalar_select %p122, %s123, %s124
      %p128 = pneg %p122
      %p129 = scmp.eq.s32.totalorder %s10, 1
      %p130 = por %p128, %p129
      %p131 = scmp.ne.s32.totalorder %s123, %s126
      %p132 = scmp.eq.s32.totalorder %s10, 0
      %p133 = por %p131, %p132
      %p134 = scmp.ne.s32.totalorder %s123, %s126
      %p135 = scmp.eq.s32.totalorder %s15, 1
      %p136 = por %p134, %p135
      %p137 = scmp.ne.s32.totalorder %s126, %s127
      %p138 = scmp.eq.s32.totalorder %s15, 0
      %p139 = por %p137, %p138
      %p140 = scmp.ne.s32.totalorder %s126, %s127
      %p141 = scmp.eq.s32.totalorder %s16, 1
      %p142 = por %p140, %p141
      %p144 = scmp.ne.s32.totalorder %s127, %s143
      %p145 = scmp.eq.s32.totalorder %s16, 0
      %p146 = por %p144, %p145
      %p147 = scmp.le.s32.totalorder 1, %s10
      %p148 = scmp.lt.s32.totalorder %s10, 3
      %p149 = pnand %p147, %p148
      %p150 = pneg %p149
      // Predicated region
      $region9: #{extended_linear_fused.1} parent=5 // pred_check
        _
      $region10: #{extended_linear_fused.1} parent=5 // pred_check_branch
        %152 = sbr.rel (%p149) target = $region12
      $region11: #{extended_linear_fused.1} parent=5 // pred_region
        %s153 = ssub.s32 %s10, 1
        // Predicated region
        $region13: #{extended_linear_fused.1} parent=11 // pred_check
          %p154 = pneg %p85
        $region14: #{extended_linear_fused.1} parent=11 // pred_check_branch
          %156 = sbr.rel (%p154) target = $region16
        $region15: #{extended_linear_fused.1} parent=11 // pred_region
          %s157 = smul.u32 16, %s22
          %s159 = ssub.s32 2048, 2048
          %160 = vsyncadd [#allocation3], %s159
          %s161 = sadd.s32 %s21, %s157
          %s162 = smul.addr %s161, 128
          %s163 = scalar_lea.hbm %s1, %s162
          %s164 = sshll.u32 [#allocation2], 4
          %s165 = int_to_ptr.vmem [resolvable:$true] %s164
          %170 = dma.hbm_to_vmem [thread:$0]  %s163, 2048, %s165, [#allocation3], 128, 128, 8
        $region16: #{extended_linear_fused.1} parent=11 // pred_fallthru
          _
        // Predicated region
        $region17: #{extended_linear_fused.1} parent=11 // pred_check
          %p171 = pneg %p111
        $region18: #{extended_linear_fused.1} parent=11 // pred_check_branch
          %173 = sbr.rel (%p171) target = $region20
        $region19: #{extended_linear_fused.1} parent=11 // pred_region
          %p174 = scmp.lt.s32.totalorder %s21, 0
          %s175 = scalar_select %p174, %s21, 0
          %s176 = scalar_lea.vmem %s2, %s175
        $region20: #{extended_linear_fused.1} parent=11 // pred_fallthru
          _
      $region12: #{extended_linear_fused.1} parent=5 // pred_fallthru
        _
      %p177 = scmp.lt.s32.totalorder %s10, 2
      // Predicated region
      $region21: #{extended_linear_fused.1} parent=5 // pred_check
        %p178 = pneg %p177
      $region22: #{extended_linear_fused.1} parent=5 // pred_check_branch
        %180 = sbr.rel (%p178) target = $region24
      $region23: #{extended_linear_fused.1} parent=5 // pred_region
        // Predicated region
        $region25: #{extended_linear_fused.1} parent=23 // pred_check
          %p181 = pneg %p51
        $region26: #{extended_linear_fused.1} parent=23 // pred_check_branch
          %183 = sbr.rel (%p181) target = $region28
        $region27: #{extended_linear_fused.1} parent=23 // pred_region
          %p184 = scmp.lt.s32.totalorder %s17, 1
          %s185 = scalar_select %p184, %s17, 1
          %p186 = scmp.lt.s32.totalorder %s19, 0
          %s187 = scalar_select %p186, %s19, 0
          %s188 = sadd.s32 %s187, %s185
          %s189 = smul.addr %s188, 8
          %s190 = scalar_lea.vmem %s0, %s189
        $region28: #{extended_linear_fused.1} parent=23 // pred_fallthru
          _
      $region24: #{extended_linear_fused.1} parent=5 // pred_fallthru
        _
      %p191 = scmp.le.s32.totalorder 1, %s10
      %p192 = scmp.lt.s32.totalorder %s10, 3
      %p193 = pnand %p191, %p192
      %p194 = pneg %p193
      // Predicated region
      $region29: #{extended_linear_fused.1} parent=5 // pred_check
        _
      $region30: #{extended_linear_fused.1} parent=5 // pred_check_branch
        %196 = sbr.rel (%p193) target = $region32
      $region31: #{extended_linear_fused.1} parent=5 // pred_region
        %s197 = ssub.s32 %s10, 1
        // Predicated region
        $region33: #{extended_linear_fused.1} parent=31 // pred_check
          %p198 = pneg %p85
        $region34: #{extended_linear_fused.1} parent=31 // pred_check_branch
          %200 = sbr.rel (%p198) target = $region36
        $region35: #{extended_linear_fused.1} parent=31 // pred_region
          %201 = dma.done [#allocation3], 2048
        $region36: #{extended_linear_fused.1} parent=31 // pred_fallthru
          _
        %p202 = scmp.lt.s32.totalorder %s20, 1
        %s203 = scalar_select %p202, %s20, 1
        %p204 = scmp.lt.s32.totalorder %s22, 0
        %s205 = scalar_select %p204, %s22, 0
        %s206 = sadd.s32 %s205, %s203
        %s207 = smul.addr %s206, 8
        %s208 = scalar_lea.vmem %s0, %s207
        %p209 = pneg %p57
        %p210 = pneg %p54
        %p211 = pneg %p85
        %p212 = pneg %p82
        %p213 = scmp.lt.s32.totalorder %s21, 0
        %s214 = scalar_select %p213, %s21, 0
        %s215 = scalar_lea.vmem %s2, %s214
        %p216 = pneg %p111
        %p217 = pneg %p108
        %p218 = pneg %p139
        %p219 = pneg %p136
        %p220 = scmp.lt.s32.totalorder %s20, 1
        %s221 = scalar_select %p220, %s20, 1
        %p222 = scmp.lt.s32.totalorder %s21, 0
        %s223 = scalar_select %p222, %s21, 0
        %s224 = sadd.s32 %s223, %s221
        %s225 = smul.addr %s224, 8
        %s226 = scalar_lea.vmem %s3, %s225
        %p227 = scmp.lt.s32.totalorder %s20, 1
        %s228 = scalar_select %p227, %s20, 1
        %p229 = scmp.lt.s32.totalorder %s22, 0
        %s230 = scalar_select %p229, %s22, 0
        %s231 = sadd.s32 %s230, %s228
        %s232 = smul.addr %s231, 8
        %s233 = scalar_lea.vmem %s0, %s232
        %s234 = smul.u32 16, %s22
        %p235 = scmp.lt.s32.totalorder %s21, 0
        %s236 = scalar_select %p235, %s21, 0
        %s237 = scalar_lea.vmem %s2, %s236
        %p238 = scmp.lt.s32.totalorder %s20, 1
        %s239 = scalar_select %p238, %s20, 1
        %p240 = scmp.lt.s32.totalorder %s21, 0
        %s241 = scalar_select %p240, %s21, 0
        %s242 = sadd.s32 %s241, %s239
        %s243 = smul.addr %s242, 8
        %s244 = scalar_lea.vmem %s3, %s243
        %v245 = vld [vmem:[%s233] sm:$0xff]
        %v246 = vld [vmem:[#allocation2] sm:$0xff]
        %v247 = vld [vmem:[#allocation2 + $0x8] sm:$0xff]
        %v248 = vld [vmem:[#allocation2 + $0x10] sm:$0xff]
        %v249 = vld [vmem:[#allocation2 + $0x18] sm:$0xff]
        %v250 = vld [vmem:[#allocation2 + $0x20] sm:$0xff]
        %v251 = vld [vmem:[#allocation2 + $0x28] sm:$0xff]
        %v252 = vld [vmem:[#allocation2 + $0x30] sm:$0xff]
        %v253 = vld [vmem:[#allocation2 + $0x38] sm:$0xff]
        %v254 = vld [vmem:[#allocation2 + $0x40] sm:$0xff]
        %v255 = vld [vmem:[#allocation2 + $0x48] sm:$0xff]
        %v256 = vld [vmem:[#allocation2 + $0x50] sm:$0xff]
        %v257 = vld [vmem:[#allocation2 + $0x58] sm:$0xff]
        %v258 = vld [vmem:[#allocation2 + $0x60] sm:$0xff]
        %v259 = vld [vmem:[#allocation2 + $0x68] sm:$0xff]
        %v260 = vld [vmem:[#allocation2 + $0x70] sm:$0xff]
        %v261 = vld [vmem:[#allocation2 + $0x78] sm:$0xff]
        %v262 = vld [vmem:[%s237] sm:$0x1]
        %v264 = vlaneseq
        %v265 = vshrl.u32 %v264, 7
        %v266 = vsub.s32 0, %v265
        %v267 = vrot.slane %v262, %v266
        %269 = vmatprep.subr.mxu0 0.0
        %270 = vmatpush1.msra.mxu0 %v261
        %271 = vmatprep.subr.mxu0 0.0
        %272 = vmatpush1.msra.mxu0 %v260
        %273 = vmatprep.subr.mxu0 0.0
        %274 = vmatpush1.msra.mxu0 %v259
        %275 = vmatprep.subr.mxu0 0.0
        %276 = vmatpush1.msra.mxu0 %v258
        %277 = vmatprep.subr.mxu0 0.0
        %278 = vmatpush1.msra.mxu0 %v257
        %279 = vmatprep.subr.mxu0 0.0
        %280 = vmatpush1.msra.mxu0 %v256
        %281 = vmatprep.subr.mxu0 0.0
        %282 = vmatpush1.msra.mxu0 %v255
        %283 = vmatprep.subr.mxu0 0.0
        %284 = vmatpush1.msra.mxu0 %v254
        %285 = vmatprep.subr.mxu0 0.0
        %286 = vmatpush1.msra.mxu0 %v253
        %287 = vmatprep.subr.mxu0 0.0
        %288 = vmatpush1.msra.mxu0 %v252
        %289 = vmatprep.subr.mxu0 0.0
        %290 = vmatpush1.msra.mxu0 %v251
        %291 = vmatprep.subr.mxu0 0.0
        %292 = vmatpush1.msra.mxu0 %v250
        %293 = vmatprep.subr.mxu0 0.0
        %294 = vmatpush1.msra.mxu0 %v249
        %295 = vmatprep.subr.mxu0 0.0
        %296 = vmatpush1.msra.mxu0 %v248
        %297 = vmatprep.subr.mxu0 0.0
        %298 = vmatpush1.msra.mxu0 %v247
        %299 = vmatprep.subr.mxu0 0.0
        %300 = vmatpush1.msra.mxu0 %v246
        %301 = vmatprep.subr.mxu0 0.0
        %302 = vmatpush2.msra.mxu0 0.0
        %303 = vmatprep.subr.mxu0 0.0
        %304 = vmatpush2.msra.mxu0 0.0
        %305 = vmatprep.subr.mxu0 0.0
        %306 = vmatpush2.msra.mxu0 0.0
        %307 = vmatprep.subr.mxu0 0.0
        %308 = vmatpush2.msra.mxu0 0.0
        %309 = vmatprep.subr.mxu0 0.0
        %310 = vmatpush2.msra.mxu0 0.0
        %311 = vmatprep.subr.mxu0 0.0
        %312 = vmatpush2.msra.mxu0 0.0
        %313 = vmatprep.subr.mxu0 0.0
        %314 = vmatpush2.msra.mxu0 0.0
        %315 = vmatprep.subr.mxu0 0.0
        %316 = vmatpush2.msra.mxu0 0.0
        %317 = vmatprep.subr.mxu0 0.0
        %318 = vmatpush2.msra.mxu0 0.0
        %319 = vmatprep.subr.mxu0 0.0
        %320 = vmatpush2.msra.mxu0 0.0
        %321 = vmatprep.subr.mxu0 0.0
        %322 = vmatpush2.msra.mxu0 0.0
        %323 = vmatprep.subr.mxu0 0.0
        %324 = vmatpush2.msra.mxu0 0.0
        %325 = vmatprep.subr.mxu0 0.0
        %326 = vmatpush2.msra.mxu0 0.0
        %327 = vmatprep.subr.mxu0 0.0
        %328 = vmatpush2.msra.mxu0 0.0
        %329 = vmatprep.subr.mxu0 0.0
        %330 = vmatpush2.msra.mxu0 0.0
        %331 = vmatprep.subr.mxu0 0.0
        %332 = vmatpush2.msra.mxu0 0.0
        %333 = vmatprep.mubr.f32.mxu0 0.0
        %334 = vmatmul.mubr.f32.gmra.mxu0 %v245
        %v335 = vpop.f32.mrf.mxu0
        %v336 = vadd.f32 %v267, %v335
        %v337 = vpop.f32.mrf.mxu0
        %338 = vdwg.mxu0
        %339 = vst [vmem:[%s244] sm:$0xff] %v336
        %p340 = scmp.lt.s32.totalorder %s20, 1
        %s341 = scalar_select %p340, %s20, 1
        %p342 = scmp.lt.s32.totalorder %s21, 0
        %s343 = scalar_select %p342, %s21, 0
        %s344 = sadd.s32 %s343, %s341
        %s345 = smul.addr %s344, 8
        %s346 = scalar_lea.vmem %s3, %s345
        // Predicated region
        $region37: #{extended_linear_fused.1} parent=31 // pred_check
          %p347 = pneg %p136
        $region38: #{extended_linear_fused.1} parent=31 // pred_check_branch
          %349 = sbr.rel (%p347) target = $region40
        $region39: #{extended_linear_fused.1} parent=31 // pred_region
          _
        $region40: #{extended_linear_fused.1} parent=31 // pred_fallthru
          _
      $region32: #{extended_linear_fused.1} parent=5 // pred_fallthru
        _
      %p350 = scmp.le.s32.totalorder 2, %s10
      // Predicated region
      $region41: #{extended_linear_fused.1} parent=5 // pred_check
        %p351 = pneg %p350
      $region42: #{extended_linear_fused.1} parent=5 // pred_check_branch
        %353 = sbr.rel (%p351) target = $region44
      $region43: #{extended_linear_fused.1} parent=5 // pred_region
        %s354 = ssub.s32 %s10, 2
        // Predicated region
        $region45: #{extended_linear_fused.1} parent=43 // pred_check
          %p355 = pneg %p142
        $region46: #{extended_linear_fused.1} parent=43 // pred_check_branch
          %357 = sbr.rel (%p355) target = $region48
        $region47: #{extended_linear_fused.1} parent=43 // pred_region
          %p358 = scmp.lt.s32.totalorder %s23, 1
          %s359 = scalar_select %p358, %s23, 1
          %p360 = scmp.lt.s32.totalorder %s24, 0
          %s361 = scalar_select %p360, %s24, 0
          %s362 = sadd.s32 %s361, %s359
          %s363 = smul.addr %s362, 8
          %s364 = scalar_lea.vmem %s3, %s363
        $region48: #{extended_linear_fused.1} parent=43 // pred_fallthru
          _
      $region44: #{extended_linear_fused.1} parent=5 // pred_fallthru
        _
    $region6: #{extended_linear_fused.1} parent=1 // loop_footer
      %s14 = sadd.s32 1, %s10
    $region7: #{extended_linear_fused.1} parent=1 // loop_footer_branch
      %9 = sbr.rel target = $region3
    $region8: #{extended_linear_fused.1} parent=1 // loop_exit
      _
    %365 = vsyncpa [#allocation3], 1
    %s366 = scalar_lea.sflag [#allocation3], 1
    %367 = vsyncpa %s366, 1

</llo_original>
